<compile_context>
chip_gen: v7x
topology: tpu7x:2x2x1
jax: 0.10.0
libtpu: 0.0.40
codegen_flags: <defaults>
</compile_context>

<pallas_src>
import functools

import jax
import jax.numpy as jnp
from jax.experimental import pallas as pl
from jax.experimental.pallas import tpu as pltpu


_VMEM_LIMIT = 48 * 1024 * 1024


def _pick_tile(dim, cap=512):
    """Largest multiple of 128 <= cap that divides dim (or dim itself if dim <= cap)."""
    if dim <= cap:
        return dim
    best = None
    t = 128
    while t <= cap:
        if dim % t == 0:
            best = t
        t += 128
    return best if best is not None else dim


# ----------------------------------------------------------------------------
# 4-D image path:  out[t,ch,d,:] = image[t,d,:] * csm[t,ch,d,:]
# ----------------------------------------------------------------------------
def _cse4_kernel(ir_ref, ii_ref, cr_ref, ci_ref, or_ref, oi_ref):
    ir = ir_ref[...][None]          # (1, D, thw)
    ii = ii_ref[...][None]
    cr = cr_ref[...]                # (CH, D, thw)
    ci = ci_ref[...]
    or_ref[...] = ir * cr - ii * ci
    oi_ref[...] = ir * ci + ii * cr


def cse_static_apply_4d(img_r, img_i, csm_r, csm_i):
    """img planes (T,D,HW) f32, csm planes (T,CH,D,HW) f32 -> (T,CH,D,HW) f32 planes."""
    T, D, HW = img_r.shape
    CH = csm_r.shape[1]
    t_hw = _pick_tile(HW)
    img_spec = pl.BlockSpec((None, D, t_hw), lambda t, n: (t, 0, n))
    csm_spec = pl.BlockSpec((None, CH, D, t_hw), lambda t, n: (t, 0, 0, n))
    out_spec = pl.BlockSpec((None, CH, D, t_hw), lambda t, n: (t, 0, 0, n))
    return pl.pallas_call(
        _cse4_kernel,
        out_shape=(jax.ShapeDtypeStruct((T, CH, D, HW), jnp.float32),
                   jax.ShapeDtypeStruct((T, CH, D, HW), jnp.float32)),
        grid=(T, HW // t_hw),
        in_specs=[img_spec, img_spec, csm_spec, csm_spec],
        out_specs=(out_spec, out_spec),
        compiler_params=pltpu.CompilerParams(
            dimension_semantics=("parallel", "parallel"),
            vmem_limit_bytes=_VMEM_LIMIT),
    )(img_r, img_i, csm_r, csm_i)


# ----------------------------------------------------------------------------
# 5-D image path:  out[t,ph,ch,d,:] = image[t,ph,d,:] * csm[t,ch,d,:]
# ----------------------------------------------------------------------------
def _cse5_kernel(ir_ref, ii_ref, cr_ref, ci_ref, or_ref, oi_ref):
    ir = ir_ref[...][:, None]       # (PH, 1, D, thw)
    ii = ii_ref[...][:, None]
    cr = cr_ref[...][None]          # (1, CH, D, thw)
    ci = ci_ref[...][None]
    or_ref[...] = ir * cr - ii * ci
    oi_ref[...] = ir * ci + ii * cr


def cse_static_apply_5d(img_r, img_i, csm_r, csm_i):
    """img planes (T,PH,D,HW) f32, csm planes (T,CH,D,HW) f32 -> (T,PH,CH,D,HW) planes."""
    T, PH, D, HW = img_r.shape
    CH = csm_r.shape[1]
    t_hw = _pick_tile(HW)
    img_spec = pl.BlockSpec((None, PH, D, t_hw), lambda t, n: (t, 0, 0, n))
    csm_spec = pl.BlockSpec((None, CH, D, t_hw), lambda t, n: (t, 0, 0, n))
    out_spec = pl.BlockSpec((None, PH, CH, D, t_hw), lambda t, n: (t, 0, 0, 0, n))
    return pl.pallas_call(
        _cse5_kernel,
        out_shape=(jax.ShapeDtypeStruct((T, PH, CH, D, HW), jnp.float32),
                   jax.ShapeDtypeStruct((T, PH, CH, D, HW), jnp.float32)),
        grid=(T, HW // t_hw),
        in_specs=[img_spec, img_spec, csm_spec, csm_spec],
        out_specs=(out_spec, out_spec),
        compiler_params=pltpu.CompilerParams(
            dimension_semantics=("parallel", "parallel"),
            vmem_limit_bytes=_VMEM_LIMIT),
    )(img_r, img_i, csm_r, csm_i)


# ----------------------------------------------------------------------------
# Module-like wrapper mirroring the torch CSE_Static API
# ----------------------------------------------------------------------------
class CSE_Static:

    def generate_forward_operator(self, csm_kernels):
        self._csm = csm_kernels

    def forward(self, image):
        csm = self._csm
        T, CH, D, H, W = csm.shape
        HW = H * W
        cr = jnp.real(csm).astype(jnp.float32).reshape(T, CH, D, HW)
        ci = jnp.imag(csm).astype(jnp.float32).reshape(T, CH, D, HW)

        if image.ndim == 5:                      # (T, PH, D, H, W)
            PH = image.shape[1]
            ir = jnp.real(image).astype(jnp.float32).reshape(T, PH, D, HW)
            ii = jnp.imag(image).astype(jnp.float32).reshape(T, PH, D, HW)
            mr, mi = cse_static_apply_5d(ir, ii, cr, ci)
            out = (mr + 1j * mi).astype(jnp.complex64)
            return out.reshape(T, PH, CH, D, H, W)
        elif image.ndim == 4:                    # (T, D, H, W)
            ir = jnp.real(image).astype(jnp.float32).reshape(T, D, HW)
            ii = jnp.imag(image).astype(jnp.float32).reshape(T, D, HW)
            mr, mi = cse_static_apply_4d(ir, ii, cr, ci)
            out = (mr + 1j * mi).astype(jnp.complex64)
            return out.reshape(T, CH, D, H, W)
        else:
            raise ValueError("image must be 4-D or 5-D")

    __call__ = forward


if __name__ == "__main__":
    T, PH, CH, D, H, W = 2, 3, 4, 2, 16, 16

    key = jax.random.PRNGKey(0)
    ks = jax.random.split(key, 3)

    def crandn(k, shape):
        k1, k2 = jax.random.split(k)
        return (jax.random.normal(k1, shape, jnp.float32)
                + 1j * jax.random.normal(k2, shape, jnp.float32)).astype(jnp.complex64)

    csm = crandn(ks[0], (T, CH, D, H, W))
    image4 = crandn(ks[1], (T, D, H, W))
    image5 = crandn(ks[2], (T, PH, D, H, W))

    cse = CSE_Static()
    cse.generate_forward_operator(csm)

    out4 = cse.forward(image4)                    # (T, CH, D, H, W)
    out5 = cse.forward(image5)                    # (T, PH, CH, D, H, W)
    jax.block_until_ready((out4, out5))

    ref4 = image4[:, None] * csm
    ref5 = image5[:, :, None] * csm[:, None]
    assert out4.shape == ref4.shape and out5.shape == ref5.shape
    assert jnp.allclose(out4, ref4, atol=1e-5, rtol=1e-5)
    assert jnp.allclose(out5, ref5, atol=1e-5, rtol=1e-5)

    print("KERNEL_OK")
</pallas_src>

<mosaic_0001>
module attributes {stable_mosaic.version = 11 : i64} {
  func.func @_cse4_kernel(%arg0: i32, %arg1: i32, %arg2: memref<1x2x256xf32, #tpu.memory_space<vmem>>, %arg3: memref<1x2x256xf32, #tpu.memory_space<vmem>>, %arg4: memref<1x4x2x256xf32, #tpu.memory_space<vmem>>, %arg5: memref<1x4x2x256xf32, #tpu.memory_space<vmem>>, %arg6: memref<1x4x2x256xf32, #tpu.memory_space<vmem>>, %arg7: memref<1x4x2x256xf32, #tpu.memory_space<vmem>>) attributes {dimension_semantics = [#tpu.dimension_semantics<parallel>, #tpu.dimension_semantics<parallel>], iteration_bounds = array<i64: 2, 1>, scalar_prefetch = 0 : i64, scratch_operands = 0 : i64, tpu.core_type = #tpu.core_type<tc>, window_params = [{transform_indices = @transform_0, window_bounds = array<i64: 1, 2, 256>}, {transform_indices = @transform_1, window_bounds = array<i64: 1, 2, 256>}, {transform_indices = @transform_2, window_bounds = array<i64: 1, 4, 2, 256>}, {transform_indices = @transform_3, window_bounds = array<i64: 1, 4, 2, 256>}, {transform_indices = @transform_4, window_bounds = array<i64: 1, 4, 2, 256>}, {transform_indices = @transform_5, window_bounds = array<i64: 1, 4, 2, 256>}]} {
    %c0 = arith.constant 0 : index
    %c0_0 = arith.constant 0 : index
    %c0_1 = arith.constant 0 : index
    %0 = vector.load %arg2[%c0, %c0_0, %c0_1] : memref<1x2x256xf32, #tpu.memory_space<vmem>>, vector<1x2x256xf32>
    %1 = vector.shape_cast %0 : vector<1x2x256xf32> to vector<2x256xf32>
    %2 = vector.shape_cast %1 : vector<2x256xf32> to vector<1x2x256xf32>
    %c0_2 = arith.constant 0 : index
    %c0_3 = arith.constant 0 : index
    %c0_4 = arith.constant 0 : index
    %3 = vector.load %arg3[%c0_2, %c0_3, %c0_4] : memref<1x2x256xf32, #tpu.memory_space<vmem>>, vector<1x2x256xf32>
    %4 = vector.shape_cast %3 : vector<1x2x256xf32> to vector<2x256xf32>
    %5 = vector.shape_cast %4 : vector<2x256xf32> to vector<1x2x256xf32>
    %c0_5 = arith.constant 0 : index
    %c0_6 = arith.constant 0 : index
    %c0_7 = arith.constant 0 : index
    %c0_8 = arith.constant 0 : index
    %6 = vector.load %arg4[%c0_5, %c0_6, %c0_7, %c0_8] : memref<1x4x2x256xf32, #tpu.memory_space<vmem>>, vector<1x4x2x256xf32>
    %7 = vector.shape_cast %6 : vector<1x4x2x256xf32> to vector<4x2x256xf32>
    %c0_9 = arith.constant 0 : index
    %c0_10 = arith.constant 0 : index
    %c0_11 = arith.constant 0 : index
    %c0_12 = arith.constant 0 : index
    %8 = vector.load %arg5[%c0_9, %c0_10, %c0_11, %c0_12] : memref<1x4x2x256xf32, #tpu.memory_space<vmem>>, vector<1x4x2x256xf32>
    %9 = vector.shape_cast %8 : vector<1x4x2x256xf32> to vector<4x2x256xf32>
    %10 = vector.broadcast %2 : vector<1x2x256xf32> to vector<4x2x256xf32>
    %11 = arith.mulf %10, %7 : vector<4x2x256xf32>
    %12 = vector.broadcast %5 : vector<1x2x256xf32> to vector<4x2x256xf32>
    %13 = arith.mulf %12, %9 : vector<4x2x256xf32>
    %14 = arith.subf %11, %13 : vector<4x2x256xf32>
    %c0_13 = arith.constant 0 : index
    %c0_14 = arith.constant 0 : index
    %c0_15 = arith.constant 0 : index
    %c0_16 = arith.constant 0 : index
    %15 = vector.load %arg6[%c0_13, %c0_14, %c0_15, %c0_16] : memref<1x4x2x256xf32, #tpu.memory_space<vmem>>, vector<1x4x2x256xf32>
    %16 = vector.shape_cast %15 : vector<1x4x2x256xf32> to vector<4x2x256xf32>
    %17 = vector.shape_cast %14 : vector<4x2x256xf32> to vector<1x4x2x256xf32>
    tpu.vector_store %arg6[%c0_13, %c0_14, %c0_15, %c0_16], %17 {strides = array<i32>} : memref<1x4x2x256xf32, #tpu.memory_space<vmem>>, vector<1x4x2x256xf32>,
    %18 = vector.broadcast %2 : vector<1x2x256xf32> to vector<4x2x256xf32>
    %19 = arith.mulf %18, %9 : vector<4x2x256xf32>
    %20 = vector.broadcast %5 : vector<1x2x256xf32> to vector<4x2x256xf32>
    %21 = arith.mulf %20, %7 : vector<4x2x256xf32>
    %22 = arith.addf %19, %21 : vector<4x2x256xf32>
    %c0_17 = arith.constant 0 : index
    %c0_18 = arith.constant 0 : index
    %c0_19 = arith.constant 0 : index
    %c0_20 = arith.constant 0 : index
    %23 = vector.load %arg7[%c0_17, %c0_18, %c0_19, %c0_20] : memref<1x4x2x256xf32, #tpu.memory_space<vmem>>, vector<1x4x2x256xf32>
    %24 = vector.shape_cast %23 : vector<1x4x2x256xf32> to vector<4x2x256xf32>
    %25 = vector.shape_cast %22 : vector<4x2x256xf32> to vector<1x4x2x256xf32>
    tpu.vector_store %arg7[%c0_17, %c0_18, %c0_19, %c0_20], %25 {strides = array<i32>} : memref<1x4x2x256xf32, #tpu.memory_space<vmem>>, vector<1x4x2x256xf32>,
    return
  }
  func.func @transform_0(%arg0: i32, %arg1: i32) -> (i32, i32, i32) {
    %c0_i32 = arith.constant 0 : i32
    %c0_i32_0 = arith.constant 0 : i32
    return %arg0, %c0_i32, %arg1 : i32, i32, i32
  }
  func.func @transform_1(%arg0: i32, %arg1: i32) -> (i32, i32, i32) {
    %c0_i32 = arith.constant 0 : i32
    %c0_i32_0 = arith.constant 0 : i32
    return %arg0, %c0_i32, %arg1 : i32, i32, i32
  }
  func.func @transform_2(%arg0: i32, %arg1: i32) -> (i32, i32, i32, i32) {
    %c0_i32 = arith.constant 0 : i32
    %c0_i32_0 = arith.constant 0 : i32
    %c0_i32_1 = arith.constant 0 : i32
    return %arg0, %c0_i32, %c0_i32_0, %arg1 : i32, i32, i32, i32
  }
  func.func @transform_3(%arg0: i32, %arg1: i32) -> (i32, i32, i32, i32) {
    %c0_i32 = arith.constant 0 : i32
    %c0_i32_0 = arith.constant 0 : i32
    %c0_i32_1 = arith.constant 0 : i32
    return %arg0, %c0_i32, %c0_i32_0, %arg1 : i32, i32, i32, i32
  }
  func.func @transform_4(%arg0: i32, %arg1: i32) -> (i32, i32, i32, i32) {
    %c0_i32 = arith.constant 0 : i32
    %c0_i32_0 = arith.constant 0 : i32
    %c0_i32_1 = arith.constant 0 : i32
    return %arg0, %c0_i32, %c0_i32_0, %arg1 : i32, i32, i32, i32
  }
  func.func @transform_5(%arg0: i32, %arg1: i32) -> (i32, i32, i32, i32) {
    %c0_i32 = arith.constant 0 : i32
    %c0_i32_0 = arith.constant 0 : i32
    %c0_i32_1 = arith.constant 0 : i32
    return %arg0, %c0_i32, %c0_i32_0, %arg1 : i32, i32, i32, i32
  }
}

</mosaic_0001>

<llo_original>
// kernel: tpu_custom_call.1
$region0: #{tpu_custom_call.1}
  #allocation0 [shape = 'u32[]', space=smem, size = 0x4, offset = 0x4, fixed_abs, tag = 'smem constant byte address 0x4 - core index']
  #allocation1 [shape = 'u32[144,128]{1,0:T(1,128)}', space=vmem, size = 0x12000, scoped, tag = 'internal scratch']
  %s0 = inlined_call_operand.hbm [shape: f32[2,2,256], index: 0, kind: input, shape index: {}]
  %s1 = inlined_call_operand.hbm [shape: f32[2,2,256], index: 1, kind: input, shape index: {}]
  %s2 = inlined_call_operand.hbm [shape: f32[2,4,2,256], index: 2, kind: input, shape index: {}]
  %s3 = inlined_call_operand.hbm [shape: f32[2,4,2,256], index: 3, kind: input, shape index: {}]
  %s4 = inlined_call_operand.hbm [shape: f32[2,4,2,256], index: 4, kind: output, shape index: {0}]
  %s5 = inlined_call_operand.hbm [shape: f32[2,4,2,256], index: 5, kind: output, shape index: {1}]
  %6 = xla_tuple %s4, %s5
  %s7 = sld [smem:[#allocation0]]
  $region73: #{tpu_custom_call.1} parent=0
    _
  %s9 = ssub.s32 1, %s7
  %s10 = scalar_select 0, %s9, %s7
  $region1: #{tpu_custom_call.1} parent=0
    #allocation2 [shape = 'u8[4096]{0}', space=vmem, size = 0x1000, scoped, tag = 'input window, operand 0']
    #allocation3 [shape = 's32[2]{0}', space=sflag, size = 0x8, scoped, tag = 'scoped memory for tpu_custom_call.1']
    #allocation4 [shape = 's32[2]{0}', space=sflag, size = 0x8, scoped, tag = 'scoped memory for tpu_custom_call.1']
    #allocation5 [shape = 'u8[4096]{0}', space=vmem, size = 0x1000, scoped, tag = 'input window, operand 1']
    #allocation6 [shape = 's32[2]{0}', space=sflag, size = 0x8, scoped, tag = 'scoped memory for tpu_custom_call.1']
    #allocation7 [shape = 'u8[16384]{0}', space=vmem, size = 0x4000, scoped, tag = 'input window, operand 2']
    #allocation8 [shape = 'u8[16384]{0}', space=vmem, size = 0x4000, scoped, tag = 'input window, operand 3']
    #allocation9 [shape = 's32[2]{0}', space=sflag, size = 0x8, scoped, tag = 'scoped memory for tpu_custom_call.1']
    #allocation10 [shape = 'u8[16384]{0}', space=vmem, size = 0x4000, scoped, tag = 'output window, operand 0']
    #allocation11 [shape = 'u8[16384]{0}', space=vmem, size = 0x4000, scoped, tag = 'output window, operand 1']
    #allocation12 [shape = 's32[2]{0}', space=sflag, size = 0x8, scoped, tag = 'scoped memory for tpu_custom_call.1']
    %11 = vsyncpa [#allocation3], 0
    %s12 = scalar_lea.sflag [#allocation3], 1
    %13 = vsyncpa %s12, 0
    %14 = vsyncpa [#allocation6], 0
    %s15 = scalar_lea.sflag [#allocation6], 1
    %16 = vsyncpa %s15, 0
    %17 = vsyncpa [#allocation9], 0
    %s18 = scalar_lea.sflag [#allocation9], 1
    %19 = vsyncpa %s18, 0
    %20 = vsyncpa [#allocation4], 0
    %s21 = scalar_lea.sflag [#allocation4], 1
    %22 = vsyncpa %s21, 0
    %23 = vsyncpa [#allocation12], 0
    %s24 = scalar_lea.sflag [#allocation12], 1
    %25 = vsyncpa %s24, 0
    loop: start=0, step=1, limit=4
    $region2: #{tpu_custom_call.1} parent=1 // loop_pre_header
      _
    $region3: #{tpu_custom_call.1} parent=1 // loop_header
      %s27 = sphi 0, %s31
      %p28 = scmp.ge.s32.totalorder %s27, 4
      %s34 = sphi 0, %s46
      %s35 = sphi 0, %s42
      %s36 = sphi 0, %s34
      %s37 = sphi 0, %s35
      %s38 = sphi 0, %s36
      %s39 = sphi 0, %s37
      %s51 = sphi 0, %s53
      %s54 = sphi 0, %s51
      %s55 = sphi 0, %s54
      %s71 = sphi 0, %s55
      %s79 = sphi 0, %s81
      %s82 = sphi 0, %s79
      %s83 = sphi 0, %s82
      %s99 = sphi 0, %s83
      %s107 = sphi 0, %s109
      %s110 = sphi 0, %s107
      %s111 = sphi 0, %s110
      %s127 = sphi 0, %s111
      %s135 = sphi 0, %s137
      %s138 = sphi 0, %s135
      %s139 = sphi 0, %s138
      %s155 = sphi 0, %s139
      %s163 = sphi 0, %s165
      %s166 = sphi 0, %s163
      %s167 = sphi 0, %s166
      %s183 = sphi 0, %s167
      %s191 = sphi 0, %s193
      %s194 = sphi 0, %s191
      %s195 = sphi 0, %s194
      %s211 = sphi 0, %s195
    $region4: #{tpu_custom_call.1} parent=1 // loop_header_branch
      %30 = sbr.rel (%p28) target = $region8
    $region5: #{tpu_custom_call.1} parent=1 // loop_body
      %s32 = ssub.s32 %s27, 1
      %s33 = ssub.s32 %s27, 2
      %s40 = sadd.s32 1, %s35
      %p41 = scmp.ge.s32.totalorder %s40, 1
      %s42 = scalar_select %p41, 0, %s40
      %s43 = sadd.s32 1, %s34
      %s44 = scalar_select %p41, %s43, %s34
      %p45 = scmp.ge.s32.totalorder %s44, 2
      %s46 = scalar_select %p45, 0, %s44
      %s47 = ssub.s32 %s34, %s46
      %s48 = ssub.s32 %s35, %s42
      %s49 = sor.u32 %s47, %s48
      %p50 = scmp.eq.s32.totalorder %s49, 0
      %s52 = sadd.s32 %s51, 1
      %s53 = scalar_select %p50, %s51, %s52
      %p56 = pneg %p50
      %p57 = scmp.eq.s32.totalorder %s27, 1
      %p58 = por %p56, %p57
      %p59 = scmp.ne.s32.totalorder %s51, %s54
      %p60 = scmp.eq.s32.totalorder %s27, 0
      %p61 = por %p59, %p60
      %p62 = scmp.ne.s32.totalorder %s51, %s54
      %p63 = scmp.eq.s32.totalorder %s32, 1
      %p64 = por %p62, %p63
      %p65 = scmp.ne.s32.totalorder %s54, %s55
      %p66 = scmp.eq.s32.totalorder %s32, 0
      %p67 = por %p65, %p66
      %p68 = scmp.ne.s32.totalorder %s54, %s55
      %p69 = scmp.eq.s32.totalorder %s33, 1
      %p70 = por %p68, %p69
      %p72 = scmp.ne.s32.totalorder %s55, %s71
      %p73 = scmp.eq.s32.totalorder %s33, 0
      %p74 = por %p72, %p73
      %s75 = ssub.s32 %s34, %s46
      %s76 = ssub.s32 %s35, %s42
      %s77 = sor.u32 %s75, %s76
      %p78 = scmp.eq.s32.totalorder %s77, 0
      %s80 = sadd.s32 %s79, 1
      %s81 = scalar_select %p78, %s79, %s80
      %p84 = pneg %p78
      %p85 = scmp.eq.s32.totalorder %s27, 1
      %p86 = por %p84, %p85
      %p87 = scmp.ne.s32.totalorder %s79, %s82
      %p88 = scmp.eq.s32.totalorder %s27, 0
      %p89 = por %p87, %p88
      %p90 = scmp.ne.s32.totalorder %s79, %s82
      %p91 = scmp.eq.s32.totalorder %s32, 1
      %p92 = por %p90, %p91
      %p93 = scmp.ne.s32.totalorder %s82, %s83
      %p94 = scmp.eq.s32.totalorder %s32, 0
      %p95 = por %p93, %p94
      %p96 = scmp.ne.s32.totalorder %s82, %s83
      %p97 = scmp.eq.s32.totalorder %s33, 1
      %p98 = por %p96, %p97
      %p100 = scmp.ne.s32.totalorder %s83, %s99
      %p101 = scmp.eq.s32.totalorder %s33, 0
      %p102 = por %p100, %p101
      %s103 = ssub.s32 %s34, %s46
      %s104 = ssub.s32 %s35, %s42
      %s105 = sor.u32 %s103, %s104
      %p106 = scmp.eq.s32.totalorder %s105, 0
      %s108 = sadd.s32 %s107, 1
      %s109 = scalar_select %p106, %s107, %s108
      %p112 = pneg %p106
      %p113 = scmp.eq.s32.totalorder %s27, 1
      %p114 = por %p112, %p113
      %p115 = scmp.ne.s32.totalorder %s107, %s110
      %p116 = scmp.eq.s32.totalorder %s27, 0
      %p117 = por %p115, %p116
      %p118 = scmp.ne.s32.totalorder %s107, %s110
      %p119 = scmp.eq.s32.totalorder %s32, 1
      %p120 = por %p118, %p119
      %p121 = scmp.ne.s32.totalorder %s110, %s111
      %p122 = scmp.eq.s32.totalorder %s32, 0
      %p123 = por %p121, %p122
      %p124 = scmp.ne.s32.totalorder %s110, %s111
      %p125 = scmp.eq.s32.totalorder %s33, 1
      %p126 = por %p124, %p125
      %p128 = scmp.ne.s32.totalorder %s111, %s127
      %p129 = scmp.eq.s32.totalorder %s33, 0
      %p130 = por %p128, %p129
      %s131 = ssub.s32 %s34, %s46
      %s132 = ssub.s32 %s35, %s42
      %s133 = sor.u32 %s131, %s132
      %p134 = scmp.eq.s32.totalorder %s133, 0
      %s136 = sadd.s32 %s135, 1
      %s137 = scalar_select %p134, %s135, %s136
      %p140 = pneg %p134
      %p141 = scmp.eq.s32.totalorder %s27, 1
      %p142 = por %p140, %p141
      %p143 = scmp.ne.s32.totalorder %s135, %s138
      %p144 = scmp.eq.s32.totalorder %s27, 0
      %p145 = por %p143, %p144
      %p146 = scmp.ne.s32.totalorder %s135, %s138
      %p147 = scmp.eq.s32.totalorder %s32, 1
      %p148 = por %p146, %p147
      %p149 = scmp.ne.s32.totalorder %s138, %s139
      %p150 = scmp.eq.s32.totalorder %s32, 0
      %p151 = por %p149, %p150
      %p152 = scmp.ne.s32.totalorder %s138, %s139
      %p153 = scmp.eq.s32.totalorder %s33, 1
      %p154 = por %p152, %p153
      %p156 = scmp.ne.s32.totalorder %s139, %s155
      %p157 = scmp.eq.s32.totalorder %s33, 0
      %p158 = por %p156, %p157
      %s159 = ssub.s32 %s34, %s46
      %s160 = ssub.s32 %s35, %s42
      %s161 = sor.u32 %s159, %s160
      %p162 = scmp.eq.s32.totalorder %s161, 0
      %s164 = sadd.s32 %s163, 1
      %s165 = scalar_select %p162, %s163, %s164
      %p168 = pneg %p162
      %p169 = scmp.eq.s32.totalorder %s27, 1
      %p170 = por %p168, %p169
      %p171 = scmp.ne.s32.totalorder %s163, %s166
      %p172 = scmp.eq.s32.totalorder %s27, 0
      %p173 = por %p171, %p172
      %p174 = scmp.ne.s32.totalorder %s163, %s166
      %p175 = scmp.eq.s32.totalorder %s32, 1
      %p176 = por %p174, %p175
      %p177 = scmp.ne.s32.totalorder %s166, %s167
      %p178 = scmp.eq.s32.totalorder %s32, 0
      %p179 = por %p177, %p178
      %p180 = scmp.ne.s32.totalorder %s166, %s167
      %p181 = scmp.eq.s32.totalorder %s33, 1
      %p182 = por %p180, %p181
      %p184 = scmp.ne.s32.totalorder %s167, %s183
      %p185 = scmp.eq.s32.totalorder %s33, 0
      %p186 = por %p184, %p185
      %s187 = ssub.s32 %s34, %s46
      %s188 = ssub.s32 %s35, %s42
      %s189 = sor.u32 %s187, %s188
      %p190 = scmp.eq.s32.totalorder %s189, 0
      %s192 = sadd.s32 %s191, 1
      %s193 = scalar_select %p190, %s191, %s192
      %p196 = pneg %p190
      %p197 = scmp.eq.s32.totalorder %s27, 1
      %p198 = por %p196, %p197
      %p199 = scmp.ne.s32.totalorder %s191, %s194
      %p200 = scmp.eq.s32.totalorder %s27, 0
      %p201 = por %p199, %p200
      %p202 = scmp.ne.s32.totalorder %s191, %s194
      %p203 = scmp.eq.s32.totalorder %s32, 1
      %p204 = por %p202, %p203
      %p205 = scmp.ne.s32.totalorder %s194, %s195
      %p206 = scmp.eq.s32.totalorder %s32, 0
      %p207 = por %p205, %p206
      %p208 = scmp.ne.s32.totalorder %s194, %s195
      %p209 = scmp.eq.s32.totalorder %s33, 1
      %p210 = por %p208, %p209
      %p212 = scmp.ne.s32.totalorder %s195, %s211
      %p213 = scmp.eq.s32.totalorder %s33, 0
      %p214 = por %p212, %p213
      %p215 = scmp.le.s32.totalorder 1, %s27
      %p216 = scmp.lt.s32.totalorder %s27, 3
      %p217 = pnand %p215, %p216
      %p218 = pneg %p217
      // Predicated region
      $region9: #{tpu_custom_call.1} parent=5 // pred_check
        _
      $region10: #{tpu_custom_call.1} parent=5 // pred_check_branch
        %220 = sbr.rel (%p217) target = $region12
      $region11: #{tpu_custom_call.1} parent=5 // pred_region
        %s221 = ssub.s32 %s27, 1
      $region12: #{tpu_custom_call.1} parent=5 // pred_fallthru
        _
      %p222 = scmp.lt.s32.totalorder %s27, 2
      // Predicated region
      $region13: #{tpu_custom_call.1} parent=5 // pred_check
        %p223 = pneg %p222
      $region14: #{tpu_custom_call.1} parent=5 // pred_check_branch
        %225 = sbr.rel (%p223) target = $region16
      $region15: #{tpu_custom_call.1} parent=5 // pred_region
        // Predicated region
        $region17: #{tpu_custom_call.1} parent=15 // pred_check
          %p226 = pneg %p61
        $region18: #{tpu_custom_call.1} parent=15 // pred_check_branch
          %228 = sbr.rel (%p226) target = $region20
        $region19: #{tpu_custom_call.1} parent=15 // pred_region
          %s229 = sand.u32 %s51, 1
          %s230 = scalar_lea.sflag [#allocation3], %s229
          %s231 = sand.u32 %s51, 1
          %s232 = smul.addr %s231, 4
          %s233 = scalar_lea.vmem [#allocation2], %s232
          %s234 = smul.u32 2, %s35
          %s236 = ssub.s32 64, 64
          %237 = vsyncadd %s230, %s236
          %s238 = smul.addr %s34, 2
          %s239 = sadd.s32 %s234, %s238
          %s240 = smul.addr %s239, 32
          %s241 = scalar_lea.hbm %s0, %s240
          %s243 = sshll.u32 %s233, 4
          %s244 = int_to_ptr.vmem [resolvable:$true] %s243
          %246 = dma.hbm_to_vmem [thread:$0]  %s241, 64, %s244, %s230
        $region20: #{tpu_custom_call.1} parent=15 // pred_fallthru
          _
        // Predicated region
        $region21: #{tpu_custom_call.1} parent=15 // pred_check
          %p247 = pneg %p89
        $region22: #{tpu_custom_call.1} parent=15 // pred_check_branch
          %249 = sbr.rel (%p247) target = $region24
        $region23: #{tpu_custom_call.1} parent=15 // pred_region
          %s250 = sand.u32 %s27, 1
          %s251 = scalar_lea.sflag [#allocation6], %s250
          %s252 = sand.u32 %s79, 1
          %s253 = smul.addr %s252, 4
          %s254 = scalar_lea.vmem [#allocation5], %s253
          %s255 = smul.u32 2, %s35
          %s257 = ssub.s32 64, 64
          %258 = vsyncadd %s251, %s257
          %s259 = smul.addr %s34, 2
          %s260 = sadd.s32 %s255, %s259
          %s261 = smul.addr %s260, 32
          %s262 = scalar_lea.hbm %s1, %s261
          %s264 = sshll.u32 %s254, 4
          %s265 = int_to_ptr.vmem [resolvable:$true] %s264
          %267 = dma.hbm_to_vmem [thread:$0]  %s262, 64, %s265, %s251
        $region24: #{tpu_custom_call.1} parent=15 // pred_fallthru
          _
        // Predicated region
        $region25: #{tpu_custom_call.1} parent=15 // pred_check
          %p268 = pneg %p117
        $region26: #{tpu_custom_call.1} parent=15 // pred_check_branch
          %270 = sbr.rel (%p268) target = $region28
        $region27: #{tpu_custom_call.1} parent=15 // pred_region
          %s271 = sand.u32 %s27, 1
          %s272 = scalar_lea.sflag [#allocation6], %s271
          %s273 = sand.u32 %s107, 1
          %s274 = smul.addr %s273, 16
          %s275 = scalar_lea.vmem [#allocation7], %s274
          %s276 = smul.u32 2, %s35
          %s278 = ssub.s32 256, 256
          %279 = vsyncadd %s272, %s278
          %s280 = smul.addr %s34, 8
          %s281 = sadd.s32 %s276, %s280
          %s282 = smul.addr %s281, 32
          %s283 = scalar_lea.hbm %s2, %s282
          %s284 = sshll.u32 %s275, 4
          %s285 = int_to_ptr.vmem [resolvable:$true] %s284
          %290 = dma.hbm_to_vmem [thread:$0]  %s283, 256, %s285, %s272, 64, 64, 4
        $region28: #{tpu_custom_call.1} parent=15 // pred_fallthru
          _
        // Predicated region
        $region29: #{tpu_custom_call.1} parent=15 // pred_check
          %p291 = pneg %p145
        $region30: #{tpu_custom_call.1} parent=15 // pred_check_branch
          %293 = sbr.rel (%p291) target = $region32
        $region31: #{tpu_custom_call.1} parent=15 // pred_region
          %s294 = sand.u32 %s135, 1
          %s295 = scalar_lea.sflag [#allocation9], %s294
          %s296 = sand.u32 %s135, 1
          %s297 = smul.addr %s296, 16
          %s298 = scalar_lea.vmem [#allocation8], %s297
          %s299 = smul.u32 2, %s35
          %s301 = ssub.s32 256, 256
          %302 = vsyncadd %s295, %s301
          %s303 = smul.addr %s34, 8
          %s304 = sadd.s32 %s299, %s303
          %s305 = smul.addr %s304, 32
          %s306 = scalar_lea.hbm %s3, %s305
          %s307 = sshll.u32 %s298, 4
          %s308 = int_to_ptr.vmem [resolvable:$true] %s307
          %313 = dma.hbm_to_vmem [thread:$0]  %s306, 256, %s308, %s295, 64, 64, 4
        $region32: #{tpu_custom_call.1} parent=15 // pred_fallthru
          _
      $region16: #{tpu_custom_call.1} parent=5 // pred_fallthru
        _
      %p314 = scmp.le.s32.totalorder 1, %s27
      %p315 = scmp.lt.s32.totalorder %s27, 3
      %p316 = pnand %p314, %p315
      %p317 = pneg %p316
      // Predicated region
      $region33: #{tpu_custom_call.1} parent=5 // pred_check
        _
      $region34: #{tpu_custom_call.1} parent=5 // pred_check_branch
        %319 = sbr.rel (%p316) target = $region36
      $region35: #{tpu_custom_call.1} parent=5 // pred_region
        %s320 = ssub.s32 %s27, 1
        %s321 = sand.u32 %s54, 1
        %s322 = scalar_lea.sflag [#allocation3], %s321
        %s323 = sand.u32 %s54, 1
        %s324 = smul.addr %s323, 4
        %s325 = scalar_lea.vmem [#allocation2], %s324
        // Predicated region
        $region37: #{tpu_custom_call.1} parent=35 // pred_check
          %p326 = pneg %p67
        $region38: #{tpu_custom_call.1} parent=35 // pred_check_branch
          %328 = sbr.rel (%p326) target = $region40
        $region39: #{tpu_custom_call.1} parent=35 // pred_region
          %329 = dma.done %s322, 64
        $region40: #{tpu_custom_call.1} parent=35 // pred_fallthru
          _
        %s330 = sand.u32 %s32, 1
        %s331 = scalar_lea.sflag [#allocation6], %s330
        %s332 = sand.u32 %s82, 1
        %s333 = smul.addr %s332, 4
        %s334 = scalar_lea.vmem [#allocation5], %s333
        // Predicated region
        $region41: #{tpu_custom_call.1} parent=35 // pred_check
          %p335 = pneg %p95
        $region42: #{tpu_custom_call.1} parent=35 // pred_check_branch
          %337 = sbr.rel (%p335) target = $region44
        $region43: #{tpu_custom_call.1} parent=35 // pred_region
          %338 = dma.done %s331, 64
        $region44: #{tpu_custom_call.1} parent=35 // pred_fallthru
          _
        %s339 = sand.u32 %s32, 1
        %s340 = scalar_lea.sflag [#allocation6], %s339
        %s341 = sand.u32 %s110, 1
        %s342 = smul.addr %s341, 16
        %s343 = scalar_lea.vmem [#allocation7], %s342
        // Predicated region
        $region45: #{tpu_custom_call.1} parent=35 // pred_check
          %p344 = pneg %p123
        $region46: #{tpu_custom_call.1} parent=35 // pred_check_branch
          %346 = sbr.rel (%p344) target = $region48
        $region47: #{tpu_custom_call.1} parent=35 // pred_region
          %347 = dma.done %s340, 256
        $region48: #{tpu_custom_call.1} parent=35 // pred_fallthru
          _
        %s348 = sand.u32 %s138, 1
        %s349 = scalar_lea.sflag [#allocation9], %s348
        %s350 = sand.u32 %s138, 1
        %s351 = smul.addr %s350, 16
        %s352 = scalar_lea.vmem [#allocation8], %s351
        // Predicated region
        $region49: #{tpu_custom_call.1} parent=35 // pred_check
          %p353 = pneg %p151
        $region50: #{tpu_custom_call.1} parent=35 // pred_check_branch
          %355 = sbr.rel (%p353) target = $region52
        $region51: #{tpu_custom_call.1} parent=35 // pred_region
          %356 = dma.done %s349, 256
        $region52: #{tpu_custom_call.1} parent=35 // pred_fallthru
          _
        %s357 = sand.u32 %s54, 1
        %s358 = scalar_lea.sflag [#allocation3], %s357
        %s359 = sand.u32 %s54, 1
        %s360 = smul.addr %s359, 4
        %s361 = scalar_lea.vmem [#allocation2], %s360
        %p362 = pneg %p67
        %p363 = pneg %p64
        %s364 = sand.u32 %s32, 1
        %s365 = scalar_lea.sflag [#allocation6], %s364
        %s366 = sand.u32 %s82, 1
        %s367 = smul.addr %s366, 4
        %s368 = scalar_lea.vmem [#allocation5], %s367
        %p369 = pneg %p95
        %p370 = pneg %p92
        %s371 = sand.u32 %s32, 1
        %s372 = scalar_lea.sflag [#allocation6], %s371
        %s373 = sand.u32 %s110, 1
        %s374 = smul.addr %s373, 16
        %s375 = scalar_lea.vmem [#allocation7], %s374
        %p376 = pneg %p123
        %p377 = pneg %p120
        %s378 = sand.u32 %s138, 1
        %s379 = scalar_lea.sflag [#allocation9], %s378
        %s380 = sand.u32 %s138, 1
        %s381 = smul.addr %s380, 16
        %s382 = scalar_lea.vmem [#allocation8], %s381
        %p383 = pneg %p151
        %p384 = pneg %p148
        %p385 = pneg %p179
        %p386 = pneg %p176
        %s387 = sand.u32 %s166, 1
        %s388 = scalar_lea.sflag [#allocation4], %s387
        %s389 = sand.u32 %s166, 1
        %s390 = smul.addr %s389, 16
        %s391 = scalar_lea.vmem [#allocation10], %s390
        %p392 = pneg %p207
        %p393 = pneg %p204
        %s394 = sand.u32 %s194, 1
        %s395 = scalar_lea.sflag [#allocation12], %s394
        %s396 = sand.u32 %s194, 1
        %s397 = smul.addr %s396, 16
        %s398 = scalar_lea.vmem [#allocation11], %s397
        %s399 = smul.u32 2, %s37
        %s400 = smul.u32 2, %s37
        %s401 = smul.u32 2, %s37
        %s402 = smul.u32 2, %s37
        %s403 = smul.u32 2, %s37
        %s404 = smul.u32 2, %s37
        %v405 = vld [vmem:[%s325] sm:$0xf]
        %v406 = vld [vmem:[%s334] sm:$0xf]
        %v407 = vld [vmem:[%s343] sm:$0xf]
        %v408 = vld [vmem:[%s343 + $0x4] sm:$0xf]
        %v409 = vld [vmem:[%s343 + $0x8] sm:$0xf]
        %v410 = vld [vmem:[%s343 + $0xc] sm:$0xf]
        %v411 = vld [vmem:[%s352] sm:$0xf]
        %v412 = vld [vmem:[%s352 + $0x4] sm:$0xf]
        %v413 = vld [vmem:[%s352 + $0x8] sm:$0xf]
        %v414 = vld [vmem:[%s352 + $0xc] sm:$0xf]
        %v415 = vmul.f32 %v405, %v407
        %v416 = vmul.f32 %v405, %v408
        %v417 = vmul.f32 %v405, %v409
        %v418 = vmul.f32 %v405, %v410
        %v419 = vmul.f32 %v406, %v411
        %v420 = vmul.f32 %v406, %v412
        %v421 = vmul.f32 %v406, %v413
        %v422 = vmul.f32 %v406, %v414
        %v423 = vsub.f32 %v415, %v419
        %v424 = vsub.f32 %v416, %v420
        %v425 = vsub.f32 %v417, %v421
        %v426 = vsub.f32 %v418, %v422
        %427 = vst [vmem:[%s391] sm:$0xf] %v423
        %428 = vst [vmem:[%s391 + $0x4] sm:$0xf] %v424
        %429 = vst [vmem:[%s391 + $0x8] sm:$0xf] %v425
        %430 = vst [vmem:[%s391 + $0xc] sm:$0xf] %v426
        %v431 = vmul.f32 %v405, %v411
        %v432 = vmul.f32 %v405, %v412
        %v433 = vmul.f32 %v405, %v413
        %v434 = vmul.f32 %v405, %v414
        %v435 = vmul.f32 %v406, %v407
        %v436 = vmul.f32 %v406, %v408
        %v437 = vmul.f32 %v406, %v409
        %v438 = vmul.f32 %v406, %v410
        %v439 = vadd.f32 %v431, %v435
        %v440 = vadd.f32 %v432, %v436
        %v441 = vadd.f32 %v433, %v437
        %v442 = vadd.f32 %v434, %v438
        %443 = vst [vmem:[%s398] sm:$0xf] %v439
        %444 = vst [vmem:[%s398 + $0x4] sm:$0xf] %v440
        %445 = vst [vmem:[%s398 + $0x8] sm:$0xf] %v441
        %446 = vst [vmem:[%s398 + $0xc] sm:$0xf] %v442
        %s447 = sand.u32 %s166, 1
        %s448 = scalar_lea.sflag [#allocation4], %s447
        %s449 = sand.u32 %s166, 1
        %s450 = smul.addr %s449, 16
        %s451 = scalar_lea.vmem [#allocation10], %s450
        %s452 = sand.u32 %s194, 1
        %s453 = scalar_lea.sflag [#allocation12], %s452
        %s454 = sand.u32 %s194, 1
        %s455 = smul.addr %s454, 16
        %s456 = scalar_lea.vmem [#allocation11], %s455
        // Predicated region
        $region53: #{tpu_custom_call.1} parent=35 // pred_check
          %p457 = pneg %p176
        $region54: #{tpu_custom_call.1} parent=35 // pred_check_branch
          %459 = sbr.rel (%p457) target = $region56
        $region55: #{tpu_custom_call.1} parent=35 // pred_region
          %s460 = smul.u32 2, %s37
          %s462 = ssub.s32 256, 256
          %463 = vsyncadd %s448, %s462
          %s464 = smul.addr %s36, 8
          %s465 = sadd.s32 %s460, %s464
          %s466 = smul.addr %s465, 32
          %s467 = scalar_lea.hbm %s4, %s466
          %s468 = sshll.u32 %s451, 4
          %s469 = int_to_ptr.vmem [resolvable:$true] %s468
          %474 = dma.vmem_to_hbm [thread:$0]  %s469, 256, %s467, %s448, 64, 64, 4
        $region56: #{tpu_custom_call.1} parent=35 // pred_fallthru
          _
        // Predicated region
        $region57: #{tpu_custom_call.1} parent=35 // pred_check
          %p475 = pneg %p204
        $region58: #{tpu_custom_call.1} parent=35 // pred_check_branch
          %477 = sbr.rel (%p475) target = $region60
        $region59: #{tpu_custom_call.1} parent=35 // pred_region
          %s478 = smul.u32 2, %s37
          %s480 = ssub.s32 256, 256
          %481 = vsyncadd %s453, %s480
          %s482 = smul.addr %s36, 8
          %s483 = sadd.s32 %s478, %s482
          %s484 = smul.addr %s483, 32
          %s485 = scalar_lea.hbm %s5, %s484
          %s486 = sshll.u32 %s456, 4
          %s487 = int_to_ptr.vmem [resolvable:$true] %s486
          %492 = dma.vmem_to_hbm [thread:$0]  %s487, 256, %s485, %s453, 64, 64, 4
        $region60: #{tpu_custom_call.1} parent=35 // pred_fallthru
          _
      $region36: #{tpu_custom_call.1} parent=5 // pred_fallthru
        _
      %p493 = scmp.le.s32.totalorder 2, %s27
      // Predicated region
      $region61: #{tpu_custom_call.1} parent=5 // pred_check
        %p494 = pneg %p493
      $region62: #{tpu_custom_call.1} parent=5 // pred_check_branch
        %496 = sbr.rel (%p494) target = $region64
      $region63: #{tpu_custom_call.1} parent=5 // pred_region
        %s497 = ssub.s32 %s27, 2
        // Predicated region
        $region65: #{tpu_custom_call.1} parent=63 // pred_check
          %p498 = pneg %p182
        $region66: #{tpu_custom_call.1} parent=63 // pred_check_branch
          %500 = sbr.rel (%p498) target = $region68
        $region67: #{tpu_custom_call.1} parent=63 // pred_region
          %s501 = sand.u32 %s167, 1
          %s502 = scalar_lea.sflag [#allocation4], %s501
          %s503 = sand.u32 %s167, 1
          %s504 = smul.addr %s503, 16
          %s505 = scalar_lea.vmem [#allocation10], %s504
          %506 = dma.done %s502, 256
        $region68: #{tpu_custom_call.1} parent=63 // pred_fallthru
          _
        // Predicated region
        $region69: #{tpu_custom_call.1} parent=63 // pred_check
          %p507 = pneg %p210
        $region70: #{tpu_custom_call.1} parent=63 // pred_check_branch
          %509 = sbr.rel (%p507) target = $region72
        $region71: #{tpu_custom_call.1} parent=63 // pred_region
          %s510 = sand.u32 %s195, 1
          %s511 = scalar_lea.sflag [#allocation12], %s510
          %s512 = sand.u32 %s195, 1
          %s513 = smul.addr %s512, 16
          %s514 = scalar_lea.vmem [#allocation11], %s513
          %515 = dma.done %s511, 256
        $region72: #{tpu_custom_call.1} parent=63 // pred_fallthru
          _
      $region64: #{tpu_custom_call.1} parent=5 // pred_fallthru
        _
    $region6: #{tpu_custom_call.1} parent=1 // loop_footer
      %s31 = sadd.s32 1, %s27
    $region7: #{tpu_custom_call.1} parent=1 // loop_footer_branch
      %26 = sbr.rel target = $region3
    $region8: #{tpu_custom_call.1} parent=1 // loop_exit
      _
    %516 = vsyncpa [#allocation3], 1
    %s517 = scalar_lea.sflag [#allocation3], 1
    %518 = vsyncpa %s517, 1
    %519 = vsyncpa [#allocation6], 1
    %s520 = scalar_lea.sflag [#allocation6], 1
    %521 = vsyncpa %s520, 1
    %522 = vsyncpa [#allocation9], 1
    %s523 = scalar_lea.sflag [#allocation9], 1
    %524 = vsyncpa %s523, 1
    %525 = vsyncpa [#allocation4], 1
    %s526 = scalar_lea.sflag [#allocation4], 1
    %527 = vsyncpa %s526, 1
    %528 = vsyncpa [#allocation12], 1
    %s529 = scalar_lea.sflag [#allocation12], 1
    %530 = vsyncpa %s529, 1

</llo_original>
